<compile_context>
chip_gen: v6e
topology: v6e:2x2x1
jax: 0.10.0
libtpu: 0.0.40
codegen_flags: <defaults>
</compile_context>

<pallas_src>
import numpy as np
import jax
import jax.numpy as jnp
from jax import lax
from jax.experimental import pallas as pl
from jax.experimental.pallas import tpu as pltpu


# ----------------------------------------------------------------------------
# fit(): host-side construction of ideal_pass (mirrors get_norm_inter + svds)
# ----------------------------------------------------------------------------
def normalized_interaction(A):
    """R = D_u^{-1/2} A D_i^{-1/2}  (dense equivalent of get_norm_inter)."""
    A = np.asarray(A, dtype=np.float64)
    user_deg = A.sum(axis=1)
    item_deg = A.sum(axis=0)
    u_inv = np.power(np.clip(user_deg, 1.0, None), -0.5)
    i_inv = np.power(np.clip(item_deg, 1.0, None), -0.5)
    u_inv[user_deg == 0] = 0.0
    i_inv[item_deg == 0] = 0.0
    return u_inv[:, None] * A * i_inv[None, :]


def fit_ideal_pass(A, threshold):
    """Top-`threshold` right singular vectors of the normalized interaction.

    Returns ideal_pass of shape (N, K), float32 (same as vt.T in the module).
    """
    R = normalized_interaction(A)
    _, _, vt = np.linalg.svd(R, full_matrices=False)       # vt: (min(U,N), N)
    return np.ascontiguousarray(vt[:threshold].T).astype(np.float32)  # (N, K)


# ----------------------------------------------------------------------------
# Pallas kernel: out_tile = (sig_tile @ V @ V^T) * weight, lane-dense (TB, N)
# ----------------------------------------------------------------------------
def make_ideal_kernel(weight):
    weight = float(weight)

    def kernel(sig_ref, v_ref, out_ref):
        # sig_ref : VMEM (TB, N) f32   -- one batch tile of the signal
        # v_ref   : VMEM (N, K)  f32   -- ideal_pass, resident across the grid
        # out_ref : VMEM (TB, N) f32
        s = sig_ref[...]
        v = v_ref[...]

        # y = s @ V                      -> (TB, K)
        y = jnp.dot(s, v, preferred_element_type=jnp.float32)

        # z = y @ V^T  without materializing V^T: contract K-axis of both.
        z = lax.dot_general(
            y, v,
            dimension_numbers=(((1,), (1,)), ((), ())),
            preferred_element_type=jnp.float32,
        )                                                   # (TB, N)

        out_ref[...] = (z * weight).astype(out_ref.dtype)

    return kernel


def _round_up(x, m):
    return ((x + m - 1) // m) * m


def ideal_filter_forward(signal, ideal_pass, weight, *, tb=256):
    """signal (B, N) f32, ideal_pass (N, K) f32 -> (B, N) f32."""
    signal = jnp.asarray(signal, jnp.float32)
    ideal_pass = jnp.asarray(ideal_pass, jnp.float32)
    B, N = signal.shape
    N2, K = ideal_pass.shape
    assert N == N2

    # Batch tile: multiple of 8 (sublane), capped at `tb` (256 for v6e/v7x MXU).
    tb_eff = min(tb, _round_up(B, 8))
    Bp = _round_up(B, tb_eff)
    if Bp != B:
        signal = jnp.pad(signal, ((0, Bp - B), (0, 0)))

    grid = (Bp // tb_eff,)

    flops = 2 * 2 * Bp * N * K                      # two matmuls per batch row
    bytes_accessed = 4 * (Bp * N + N * K + Bp * N)  # signal + V + output

    out = pl.pallas_call(
        make_ideal_kernel(weight),
        out_shape=jax.ShapeDtypeStruct((Bp, N), jnp.float32),
        grid=grid,
        in_specs=[
            # Signal: streamed batch tiles (double-buffered by Pallas).
            pl.BlockSpec((tb_eff, N), lambda i: (i, 0)),
            # ideal_pass: constant block index -> stays VMEM-resident.
            pl.BlockSpec((N, K), lambda i: (0, 0)),
        ],
        out_specs=pl.BlockSpec((tb_eff, N), lambda i: (i, 0)),
        compiler_params=pltpu.CompilerParams(
            dimension_semantics=("parallel",),
        ),
        cost_estimate=pl.CostEstimate(
            flops=flops, transcendentals=0, bytes_accessed=bytes_accessed
        ),
    )(signal, ideal_pass)

    return out[:B] if Bp != B else out


# ----------------------------------------------------------------------------
# Host-side float64 reference (mirrors the PyTorch forward exactly)
# ----------------------------------------------------------------------------
def reference_forward(signal, ideal_pass, weight):
    s = np.asarray(signal, dtype=np.float64)
    v = np.asarray(ideal_pass, dtype=np.float64)
    return (s @ v @ v.T) * float(weight)


if __name__ == "__main__":
    threshold, weight = 16, 0.3
    U, N, B = 64, 128, 8                      # users, items, batch of user rows

    key = jax.random.PRNGKey(0)
    k_inter, k_sig = jax.random.split(key)

    # Synthetic binary interaction matrix (users x items).
    A = (jax.random.uniform(k_inter, (U, N)) < 0.1).astype(jnp.float32)

    # fit(): ideal_pass = top-k right singular vectors of the normalized R.
    ideal_pass = jnp.asarray(fit_ideal_pass(np.asarray(A), threshold))  # (N, K)

    # Input signal: batch of user interaction rows (B, N), float32.
    signal = (jax.random.uniform(k_sig, (B, N)) < 0.2).astype(jnp.float32)

    out = ideal_filter_forward(signal, ideal_pass, weight)
    out = jax.block_until_ready(out)

    ref = reference_forward(np.asarray(signal), np.asarray(ideal_pass), weight)
    assert out.shape == (B, N) and out.dtype == jnp.float32
    np.testing.assert_allclose(np.asarray(out), ref, rtol=1e-4, atol=1e-4)

    print("KERNEL_OK")
</pallas_src>

<mosaic_0001>
module attributes {stable_mosaic.version = 11 : i64} {
  func.func @kernel(%arg0: i32, %arg1: memref<8x128xf32, #tpu.memory_space<vmem>>, %arg2: memref<128x16xf32, #tpu.memory_space<vmem>>, %arg3: memref<8x128xf32, #tpu.memory_space<vmem>>) attributes {dimension_semantics = [#tpu.dimension_semantics<parallel>], iteration_bounds = array<i64: 1>, scalar_prefetch = 0 : i64, scratch_operands = 0 : i64, tpu.core_type = #tpu.core_type<tc>, window_params = [{transform_indices = @transform_0, window_bounds = array<i64: 8, 128>}, {pipeline_mode = #tpu.pipeline_mode<synchronous>, transform_indices = @transform_1, window_bounds = array<i64: 128, 16>}, {transform_indices = @transform_2, window_bounds = array<i64: 8, 128>}]} {
    %c0 = arith.constant 0 : index
    %c0_0 = arith.constant 0 : index
    %0 = vector.load %arg1[%c0, %c0_0] : memref<8x128xf32, #tpu.memory_space<vmem>>, vector<8x128xf32>
    %c0_1 = arith.constant 0 : index
    %c0_2 = arith.constant 0 : index
    %1 = vector.load %arg2[%c0_1, %c0_2] : memref<128x16xf32, #tpu.memory_space<vmem>>, vector<128x16xf32>
    %cst = arith.constant dense<0.000000e+00> : vector<8x16xf32>
    %2 = tpu.matmul %0, %1, %cst {dimension_numbers = #tpu.dot_dimension_numbers<[1], [0], [0], [1], [0, 0, 1, 1], [], []>} : vector<8x128xf32>, vector<128x16xf32>, vector<8x16xf32> -> vector<8x16xf32>
    %cst_3 = arith.constant dense<0.000000e+00> : vector<8x128xf32>
    %3 = tpu.matmul %2, %1, %cst_3 {dimension_numbers = #tpu.dot_dimension_numbers<[1], [1], [0], [0], [0, 0, 1, 0], [], []>} : vector<8x16xf32>, vector<128x16xf32>, vector<8x128xf32> -> vector<8x128xf32>
    %cst_4 = arith.constant 3.000000e-01 : f32
    %4 = vector.broadcast %cst_4 : f32 to vector<8x128xf32>
    %5 = arith.mulf %3, %4 : vector<8x128xf32>
    %c0_5 = arith.constant 0 : index
    %c0_6 = arith.constant 0 : index
    %6 = vector.load %arg3[%c0_5, %c0_6] : memref<8x128xf32, #tpu.memory_space<vmem>>, vector<8x128xf32>
    tpu.vector_store %arg3[%c0_5, %c0_6], %5 {strides = array<i32>} : memref<8x128xf32, #tpu.memory_space<vmem>>, vector<8x128xf32>,
    return
  }
  func.func @transform_0(%arg0: i32) -> (i32, i32) {
    %c0_i32 = arith.constant 0 : i32
    %c0_i32_0 = arith.constant 0 : i32
    return %arg0, %c0_i32 : i32, i32
  }
  func.func @transform_1(%arg0: i32) -> (i32, i32) {
    %c0_i32 = arith.constant 0 : i32
    %c0_i32_0 = arith.constant 0 : i32
    %c0_i32_1 = arith.constant 0 : i32
    return %c0_i32, %c0_i32_0 : i32, i32
  }
  func.func @transform_2(%arg0: i32) -> (i32, i32) {
    %c0_i32 = arith.constant 0 : i32
    %c0_i32_0 = arith.constant 0 : i32
    return %arg0, %c0_i32 : i32, i32
  }
}

</mosaic_0001>

<llo_original>
// kernel: tpu_custom_call.1
$region0: #{tpu_custom_call.1}
  #allocation0 [shape = 'u32[]', space=smem, size = 0x4, offset = 0x4, fixed_abs, tag = 'smem constant byte address 0x4 - core index']
  #allocation1 [shape = 'u32[144,128]{1,0:T(1,128)}', space=vmem, size = 0x12000, scoped, tag = 'internal scratch']
  %s0 = inlined_call_operand.vmem [shape: f32[8,128], index: 0, kind: input, shape index: {}]
  %s1 = inlined_call_operand.vmem [shape: f32[128,16], index: 1, kind: input, shape index: {}]
  %s2 = inlined_call_operand.hbm [shape: f32[8,128], index: 2, kind: output, shape index: {}]
  %s3 = sld [smem:[#allocation0]]
  $region18: #{tpu_custom_call.1} parent=0
    _
  %s5 = ssub.s32 1, %s3
  %s6 = scalar_select 0, %s5, %s3
  $region1: #{tpu_custom_call.1} parent=0
    #allocation2 [shape = 'u8[4096]{0}', space=vmem, size = 0x1000, scoped, tag = 'output window, operand 0, single buffered']
    #allocation3 [shape = 's32[1]{0}', space=sflag, size = 0x4, scoped, tag = 'scoped memory for tpu_custom_call.1']
    %7 = vsyncpa [#allocation3], 0
    // Predicated region
    $region2: #{tpu_custom_call.1} parent=1 // pred_check
      _
    $region3: #{tpu_custom_call.1} parent=1 // pred_check_branch
      %9 = sbr.rel (0) target = $region5
    $region4: #{tpu_custom_call.1} parent=1 // pred_region
      _
    $region5: #{tpu_custom_call.1} parent=1 // pred_fallthru
      _
    // Predicated region
    $region6: #{tpu_custom_call.1} parent=1 // pred_check
      _
    $region7: #{tpu_custom_call.1} parent=1 // pred_check_branch
      %11 = sbr.rel (0) target = $region9
    $region8: #{tpu_custom_call.1} parent=1 // pred_region
      _
    $region9: #{tpu_custom_call.1} parent=1 // pred_fallthru
      _
    %v12 = vld [vmem:[%s0] sm:$0xff]
    %v13 = vld [vmem:[%s1] sm:$0xff]
    %v14 = vld [vmem:[%s1 + $0x8] sm:$0xff]
    %v15 = vld [vmem:[%s1 + $0x10] sm:$0xff]
    %v16 = vld [vmem:[%s1 + $0x18] sm:$0xff]
    %v17 = vld [vmem:[%s1 + $0x20] sm:$0xff]
    %v18 = vld [vmem:[%s1 + $0x28] sm:$0xff]
    %v19 = vld [vmem:[%s1 + $0x30] sm:$0xff]
    %v20 = vld [vmem:[%s1 + $0x38] sm:$0xff]
    %v21 = vld [vmem:[%s1 + $0x40] sm:$0xff]
    %v22 = vld [vmem:[%s1 + $0x48] sm:$0xff]
    %v23 = vld [vmem:[%s1 + $0x50] sm:$0xff]
    %v24 = vld [vmem:[%s1 + $0x58] sm:$0xff]
    %v25 = vld [vmem:[%s1 + $0x60] sm:$0xff]
    %v26 = vld [vmem:[%s1 + $0x68] sm:$0xff]
    %v27 = vld [vmem:[%s1 + $0x70] sm:$0xff]
    %v28 = vld [vmem:[%s1 + $0x78] sm:$0xff]
    %29 = vmatprep.subr.mxu0 0.0
    %30 = vmatpush1.msra.mxu0 %v28
    %31 = vmatprep.subr.mxu0 0.0
    %32 = vmatpush1.msra.mxu0 %v27
    %33 = vmatprep.subr.mxu0 0.0
    %34 = vmatpush1.msra.mxu0 %v26
    %35 = vmatprep.subr.mxu0 0.0
    %36 = vmatpush1.msra.mxu0 %v25
    %37 = vmatprep.subr.mxu0 0.0
    %38 = vmatpush1.msra.mxu0 %v24
    %39 = vmatprep.subr.mxu0 0.0
    %40 = vmatpush1.msra.mxu0 %v23
    %41 = vmatprep.subr.mxu0 0.0
    %42 = vmatpush1.msra.mxu0 %v22
    %43 = vmatprep.subr.mxu0 0.0
    %44 = vmatpush1.msra.mxu0 %v21
    %45 = vmatprep.subr.mxu0 0.0
    %46 = vmatpush1.msra.mxu0 %v20
    %47 = vmatprep.subr.mxu0 0.0
    %48 = vmatpush1.msra.mxu0 %v19
    %49 = vmatprep.subr.mxu0 0.0
    %50 = vmatpush1.msra.mxu0 %v18
    %51 = vmatprep.subr.mxu0 0.0
    %52 = vmatpush1.msra.mxu0 %v17
    %53 = vmatprep.subr.mxu0 0.0
    %54 = vmatpush1.msra.mxu0 %v16
    %55 = vmatprep.subr.mxu0 0.0
    %56 = vmatpush1.msra.mxu0 %v15
    %57 = vmatprep.subr.mxu0 0.0
    %58 = vmatpush1.msra.mxu0 %v14
    %59 = vmatprep.subr.mxu0 0.0
    %60 = vmatpush1.msra.mxu0 %v13
    %61 = vmatprep.subr.mxu0 0.0
    %62 = vmatpush2.msra.mxu0 0.0
    %63 = vmatprep.subr.mxu0 0.0
    %64 = vmatpush2.msra.mxu0 0.0
    %65 = vmatprep.subr.mxu0 0.0
    %66 = vmatpush2.msra.mxu0 0.0
    %67 = vmatprep.subr.mxu0 0.0
    %68 = vmatpush2.msra.mxu0 0.0
    %69 = vmatprep.subr.mxu0 0.0
    %70 = vmatpush2.msra.mxu0 0.0
    %71 = vmatprep.subr.mxu0 0.0
    %72 = vmatpush2.msra.mxu0 0.0
    %73 = vmatprep.subr.mxu0 0.0
    %74 = vmatpush2.msra.mxu0 0.0
    %75 = vmatprep.subr.mxu0 0.0
    %76 = vmatpush2.msra.mxu0 0.0
    %77 = vmatprep.subr.mxu0 0.0
    %78 = vmatpush2.msra.mxu0 0.0
    %79 = vmatprep.subr.mxu0 0.0
    %80 = vmatpush2.msra.mxu0 0.0
    %81 = vmatprep.subr.mxu0 0.0
    %82 = vmatpush2.msra.mxu0 0.0
    %83 = vmatprep.subr.mxu0 0.0
    %84 = vmatpush2.msra.mxu0 0.0
    %85 = vmatprep.subr.mxu0 0.0
    %86 = vmatpush2.msra.mxu0 0.0
    %87 = vmatprep.subr.mxu0 0.0
    %88 = vmatpush2.msra.mxu0 0.0
    %89 = vmatprep.subr.mxu0 0.0
    %90 = vmatpush2.msra.mxu0 0.0
    %91 = vmatprep.subr.mxu0 0.0
    %92 = vmatpush2.msra.mxu0 0.0
    %93 = vmatprep.mubr.f32.mxu0 0.0
    %94 = vmatmul.mubr.f32.gmra.mxu0 %v12
    %v95 = vpop.f32.mrf.mxu0
    %v96 = vadd.f32 0.0, %v95
    %v97 = vpop.f32.mrf.mxu0
    %98 = vdwg.mxu0
    %vm99 = vcmask 130048
    %v101 = vsel %vm99, %v96, 0
    %v104 = vsel %vm99, %v13, 0
    %v107 = vsel %vm99, %v14, 0
    %v110 = vsel %vm99, %v15, 0
    %v113 = vsel %vm99, %v16, 0
    %v116 = vsel %vm99, %v17, 0
    %v119 = vsel %vm99, %v18, 0
    %v122 = vsel %vm99, %v19, 0
    %v125 = vsel %vm99, %v20, 0
    %v128 = vsel %vm99, %v21, 0
    %v131 = vsel %vm99, %v22, 0
    %v134 = vsel %vm99, %v23, 0
    %v137 = vsel %vm99, %v24, 0
    %v140 = vsel %vm99, %v25, 0
    %v143 = vsel %vm99, %v26, 0
    %v146 = vsel %vm99, %v27, 0
    %v149 = vsel %vm99, %v28, 0
    %151 = vmatprep.subr.mxu0 0.0
    %152 = vmatpush1.xpose.msra.mxu0 %v149
    %153 = vmatprep.subr.mxu0 0.0
    %154 = vmatpush1.xpose.msra.mxu0 %v146
    %155 = vmatprep.subr.mxu0 0.0
    %156 = vmatpush1.xpose.msra.mxu0 %v143
    %157 = vmatprep.subr.mxu0 0.0
    %158 = vmatpush1.xpose.msra.mxu0 %v140
    %159 = vmatprep.subr.mxu0 0.0
    %160 = vmatpush1.xpose.msra.mxu0 %v137
    %161 = vmatprep.subr.mxu0 0.0
    %162 = vmatpush1.xpose.msra.mxu0 %v134
    %163 = vmatprep.subr.mxu0 0.0
    %164 = vmatpush1.xpose.msra.mxu0 %v131
    %165 = vmatprep.subr.mxu0 0.0
    %166 = vmatpush1.xpose.msra.mxu0 %v128
    %167 = vmatprep.subr.mxu0 0.0
    %168 = vmatpush1.xpose.msra.mxu0 %v125
    %169 = vmatprep.subr.mxu0 0.0
    %170 = vmatpush1.xpose.msra.mxu0 %v122
    %171 = vmatprep.subr.mxu0 0.0
    %172 = vmatpush1.xpose.msra.mxu0 %v119
    %173 = vmatprep.subr.mxu0 0.0
    %174 = vmatpush1.xpose.msra.mxu0 %v116
    %175 = vmatprep.subr.mxu0 0.0
    %176 = vmatpush1.xpose.msra.mxu0 %v113
    %177 = vmatprep.subr.mxu0 0.0
    %178 = vmatpush1.xpose.msra.mxu0 %v110
    %179 = vmatprep.subr.mxu0 0.0
    %180 = vmatpush1.xpose.msra.mxu0 %v107
    %181 = vmatprep.subr.mxu0 0.0
    %182 = vmatpush1.xpose.msra.mxu0 %v104
    %183 = vmatprep.subr.mxu0 0.0
    %184 = vmatpush2.xpose.msra.mxu0 0.0
    %185 = vmatprep.subr.mxu0 0.0
    %186 = vmatpush2.xpose.msra.mxu0 0.0
    %187 = vmatprep.subr.mxu0 0.0
    %188 = vmatpush2.xpose.msra.mxu0 0.0
    %189 = vmatprep.subr.mxu0 0.0
    %190 = vmatpush2.xpose.msra.mxu0 0.0
    %191 = vmatprep.subr.mxu0 0.0
    %192 = vmatpush2.xpose.msra.mxu0 0.0
    %193 = vmatprep.subr.mxu0 0.0
    %194 = vmatpush2.xpose.msra.mxu0 0.0
    %195 = vmatprep.subr.mxu0 0.0
    %196 = vmatpush2.xpose.msra.mxu0 0.0
    %197 = vmatprep.subr.mxu0 0.0
    %198 = vmatpush2.xpose.msra.mxu0 0.0
    %199 = vmatprep.subr.mxu0 0.0
    %200 = vmatpush2.xpose.msra.mxu0 0.0
    %201 = vmatprep.subr.mxu0 0.0
    %202 = vmatpush2.xpose.msra.mxu0 0.0
    %203 = vmatprep.subr.mxu0 0.0
    %204 = vmatpush2.xpose.msra.mxu0 0.0
    %205 = vmatprep.subr.mxu0 0.0
    %206 = vmatpush2.xpose.msra.mxu0 0.0
    %207 = vmatprep.subr.mxu0 0.0
    %208 = vmatpush2.xpose.msra.mxu0 0.0
    %209 = vmatprep.subr.mxu0 0.0
    %210 = vmatpush2.xpose.msra.mxu0 0.0
    %211 = vmatprep.subr.mxu0 0.0
    %212 = vmatpush2.xpose.msra.mxu0 0.0
    %213 = vmatprep.subr.mxu0 0.0
    %214 = vmatpush2.xpose.msra.mxu0 0.0
    %215 = vmatprep.mubr.f32.mxu0 0.0
    %216 = vmatmul.mubr.f32.gmra.mxu0 %v101
    %v217 = vpop.f32.mrf.mxu0
    %v218 = vadd.f32 0.0, %v217
    %v219 = vpop.f32.mrf.mxu0
    %220 = vdwg.mxu0
    %v221 = vmul.f32 %v218, 0.3
    %222 = vst [vmem:[#allocation2] sm:$0xff] %v221
    // Predicated region
    $region10: #{tpu_custom_call.1} parent=1 // pred_check
      _
    $region11: #{tpu_custom_call.1} parent=1 // pred_check_branch
      %224 = sbr.rel (0) target = $region13
    $region12: #{tpu_custom_call.1} parent=1 // pred_region
      %s226 = ssub.s32 128, 128
      %227 = vsyncadd [#allocation3], %s226
      %s229 = sshll.u32 [#allocation2], 4
      %s230 = int_to_ptr.vmem [resolvable:$true] %s229
      %232 = dma.vmem_to_hbm [thread:$0]  %s230, 128, %s2, [#allocation3]
    $region13: #{tpu_custom_call.1} parent=1 // pred_fallthru
      _
    // Predicated region
    $region14: #{tpu_custom_call.1} parent=1 // pred_check
      _
    $region15: #{tpu_custom_call.1} parent=1 // pred_check_branch
      %234 = sbr.rel (0) target = $region17
    $region16: #{tpu_custom_call.1} parent=1 // pred_region
      %235 = dma.done [#allocation3], 128
    $region17: #{tpu_custom_call.1} parent=1 // pred_fallthru
      _
    %236 = vsyncpa [#allocation3], 1

</llo_original>
